<compile_context>
chip_gen: v5e
topology: v5e:2x2
jax: 0.10.0
libtpu: 0.0.40
codegen_flags: <defaults>
</compile_context>

<pallas_src>
from functools import partial

import numpy as np
import jax
import jax.numpy as jnp
from jax import lax
from jax.experimental import pallas as pl
from jax.experimental.pallas import tpu as pltpu

# ----------------------------- configuration ------------------------------
PATCH_SIZE = 4
IN_CHANS = 3
EMBED_DIM = 96
EPS = 1e-5                     # nn.LayerNorm default eps


# ------------------------------ Pallas kernels -----------------------------
def _patch_embed_norm_kernel(p_ref, w_ref, b_ref, g_ref, beta_ref, o_ref):
    """Fused conv-as-matmul + bias + LayerNorm, computed in transposed form.

    p_ref    : (tm, K)   im2col patch tokens, K = C_in * p * p (f32 or bf16)
    w_ref    : (E, K)    conv weight, reshaped (same dtype as patches)
    b_ref    : (E, 1)    conv bias        (f32)
    g_ref    : (E, 1)    LayerNorm gamma  (f32)
    beta_ref : (E, 1)    LayerNorm beta   (f32)
    o_ref    : (E, tm)   channels-first output tile (lane-dense store)
    """
    # yT[e, t] = sum_k W[e, k] * patches[t, k]   (MXU, f32 accumulation)
    yt = lax.dot_general(w_ref[...], p_ref[...],
                         dimension_numbers=(((1,), (1,)), ((), ())),
                         preferred_element_type=jnp.float32)
    yt = yt + b_ref[...]                                   # (E, tm)
    # LayerNorm over the embed dim (sublane axis), all math in f32.
    mu = jnp.mean(yt, axis=0, keepdims=True)               # (1, tm)
    yc = yt - mu
    var = jnp.mean(yc * yc, axis=0, keepdims=True)
    yn = yc * lax.rsqrt(var + EPS)
    o_ref[...] = (yn * g_ref[...] + beta_ref[...]).astype(o_ref.dtype)


def _patch_embed_kernel(p_ref, w_ref, b_ref, o_ref):
    """Same as above without LayerNorm (norm_layer=None path)."""
    yt = lax.dot_general(w_ref[...], p_ref[...],
                         dimension_numbers=(((1,), (1,)), ((), ())),
                         preferred_element_type=jnp.float32)
    o_ref[...] = (yt + b_ref[...]).astype(o_ref.dtype)


# ----------------------------- Pallas wrapper ------------------------------
def _pick_token_tile(n_tok, batch):
    """Token tile = lane dim of the transposed (E, tm) output block.

    Must be a multiple of 128 or equal to the full per-image token count.
    Prefer big tiles (>=512 where possible); keep >=2 total grid steps so the
    'parallel' axes can shard across TensorCores (v7x has 2 TCs); never fall
    back to one giant un-pipelined block (VMEM stays tiny: <1 MiB/buffer).
    """
    if n_tok <= 1024:
        if batch == 1 and n_tok >= 256 and n_tok % 256 == 0:
            return n_tok // 2          # guarantee >= 2 grid steps
        return n_tok                   # one lane-dense block per image
    return 1024 if batch > 1 else 512  # cdiv grid; trailing block is masked


def _patch_embed_pallas(patches, w2d, bias, gamma, beta, use_norm):
    """patches: (B, n_tok, K) -> (B, E, n_tok) channels-first."""
    B, n_tok, K = patches.shape
    E = w2d.shape[0]
    tm = _pick_token_tile(n_tok, B)
    grid = (B, pl.cdiv(n_tok, tm))

    param_spec = pl.BlockSpec((E, 1), lambda b, t: (0, 0))
    in_specs = [
        pl.BlockSpec((None, tm, K), lambda b, t: (b, t, 0)),   # patch tokens
        pl.BlockSpec((E, K), lambda b, t: (0, 0)),             # conv weight
        param_spec,                                            # conv bias
    ]
    args = [patches, w2d, bias]
    if use_norm:
        kernel = _patch_embed_norm_kernel
        in_specs += [param_spec, param_spec]
        args += [gamma, beta]
    else:
        kernel = _patch_embed_kernel

    return pl.pallas_call(
        kernel,
        out_shape=jax.ShapeDtypeStruct((B, E, n_tok), patches.dtype),
        grid=grid,
        in_specs=in_specs,
        out_specs=pl.BlockSpec((None, E, tm), lambda b, t: (b, 0, t)),
        compiler_params=pltpu.CompilerParams(
            dimension_semantics=("parallel", "parallel")),
    )(*args)


# ------------------------------- forward glue -------------------------------
@partial(jax.jit, static_argnames=("patch_size", "use_norm"))
def patch_embed_forward(x, params, patch_size=PATCH_SIZE, use_norm=True):
    """Pallas-backed PatchEmbed.forward.  x: (B, C, H, W) -> (B, E, Hp/p, Wp/p)."""
    B, C, H, W = x.shape
    p = patch_size

    # F.pad semantics: zero-pad W on the right, H on the bottom.
    pad_h, pad_w = (-H) % p, (-W) % p
    if pad_h or pad_w:
        x = jnp.pad(x, ((0, 0), (0, 0), (0, pad_h), (0, pad_w)))
    Hp, Wp = H + pad_h, W + pad_w
    nH, nW = Hp // p, Wp // p
    n_tok = nH * nW

    # TODO(synk): im2col kept as XLA glue (single fused pad+transpose copy);
    # an in-kernel rearrangement needs lane-split reshapes Mosaic won't lower
    # cleanly at p=4, C=3.
    patches = x.reshape(B, C, nH, p, nW, p)
    patches = patches.transpose(0, 2, 4, 1, 3, 5).reshape(B, n_tok, C * p * p)

    E = params["proj_w"].shape[0]
    w2d = params["proj_w"].reshape(E, C * p * p).astype(patches.dtype)
    bias = params["proj_b"].reshape(E, 1).astype(jnp.float32)
    gamma = params["ln_g"].reshape(E, 1).astype(jnp.float32)
    beta = params["ln_b"].reshape(E, 1).astype(jnp.float32)

    y = _patch_embed_pallas(patches, w2d, bias, gamma, beta, use_norm)
    return y.reshape(B, E, nH, nW)          # free reshape (channels-first already)


# --------------------------- pure-JAX reference ------------------------------
def patch_embed_reference(x, params, patch_size=PATCH_SIZE, use_norm=True):
    B, C, H, W = x.shape
    p = patch_size
    pad_h, pad_w = (-H) % p, (-W) % p
    if pad_h or pad_w:
        x = jnp.pad(x, ((0, 0), (0, 0), (0, pad_h), (0, pad_w)))
    y = jax.lax.conv_general_dilated(
        x.astype(jnp.float32), params["proj_w"].astype(jnp.float32),
        window_strides=(p, p), padding="VALID",
        dimension_numbers=("NCHW", "OIHW", "NCHW"))
    y = y + params["proj_b"].astype(jnp.float32)[None, :, None, None]
    if use_norm:
        Bq, E, nH, nW = y.shape
        yf = y.reshape(Bq, E, nH * nW).transpose(0, 2, 1)
        mu = yf.mean(-1, keepdims=True)
        var = ((yf - mu) ** 2).mean(-1, keepdims=True)
        yf = ((yf - mu) / jnp.sqrt(var + EPS)
              * params["ln_g"].astype(jnp.float32)
              + params["ln_b"].astype(jnp.float32))
        y = yf.transpose(0, 2, 1).reshape(Bq, E, nH, nW)
    return y


# ---------------------------------- main -------------------------------------
if __name__ == "__main__":
    key = jax.random.PRNGKey(0)
    kx, kw, kb, kg, kbeta, kx2 = jax.random.split(key, 6)

    B, C, H, W = 2, IN_CHANS, 16, 16
    x = jax.random.normal(kx, (B, C, H, W), jnp.float32)

    params = {
        # nn.Conv2d weight layout (out_ch, in_ch, kH, kW); bias/LN are 1-D (E,)
        "proj_w": 0.05 * jax.random.normal(
            kw, (EMBED_DIM, C, PATCH_SIZE, PATCH_SIZE), jnp.float32),
        "proj_b": 0.02 * jax.random.normal(kb, (EMBED_DIM,), jnp.float32),
        "ln_g": 1.0 + 0.1 * jax.random.normal(kg, (EMBED_DIM,), jnp.float32),
        "ln_b": 0.1 * jax.random.normal(kbeta, (EMBED_DIM,), jnp.float32),
    }

    # --- norm_layer = nn.LayerNorm path, divisible spatial size, f32 ---------
    out = jax.block_until_ready(patch_embed_forward(x, params, use_norm=True))
    ref = patch_embed_reference(x, params, use_norm=True)
    assert out.shape == (B, EMBED_DIM, H // PATCH_SIZE, W // PATCH_SIZE)
    np.testing.assert_allclose(np.asarray(out), np.asarray(ref),
                               rtol=1e-3, atol=1e-3)

    # --- norm_layer = None path, non-divisible size (padding + 3-input call) --
    x2 = jax.random.normal(kx2, (B, C, 14, 15), jnp.float32)
    out2 = jax.block_until_ready(patch_embed_forward(x2, params, use_norm=False))
    ref2 = patch_embed_reference(x2, params, use_norm=False)
    np.testing.assert_allclose(np.asarray(out2), np.asarray(ref2),
                               rtol=1e-3, atol=1e-3)

    # --- bf16 activations/weights into the MXU (f32 accumulation + f32 LN) ----
    params_bf = {k: v.astype(jnp.bfloat16) for k, v in params.items()}
    out3 = jax.block_until_ready(
        patch_embed_forward(x.astype(jnp.bfloat16), params_bf, use_norm=True))
    np.testing.assert_allclose(np.asarray(out3, dtype=np.float32),
                               np.asarray(ref), rtol=1e-1, atol=1e-1)

    print("KERNEL_OK")
</pallas_src>

<mosaic_0001>
module attributes {stable_mosaic.version = 11 : i64} {
  func.func @_patch_embed_norm_kernel(%arg0: i32, %arg1: i32, %arg2: memref<1x16x48xf32, #tpu.memory_space<vmem>>, %arg3: memref<96x48xf32, #tpu.memory_space<vmem>>, %arg4: memref<96x1xf32, #tpu.memory_space<vmem>>, %arg5: memref<96x1xf32, #tpu.memory_space<vmem>>, %arg6: memref<96x1xf32, #tpu.memory_space<vmem>>, %arg7: memref<1x96x16xf32, #tpu.memory_space<vmem>>) attributes {dimension_semantics = [#tpu.dimension_semantics<parallel>, #tpu.dimension_semantics<parallel>], iteration_bounds = array<i64: 2, 1>, scalar_prefetch = 0 : i64, scratch_operands = 0 : i64, tpu.core_type = #tpu.core_type<tc>, window_params = [{transform_indices = @transform_0, window_bounds = array<i64: 1, 16, 48>}, {pipeline_mode = #tpu.pipeline_mode<synchronous>, transform_indices = @transform_1, window_bounds = array<i64: 96, 48>}, {pipeline_mode = #tpu.pipeline_mode<synchronous>, transform_indices = @transform_2, window_bounds = array<i64: 96, 1>}, {pipeline_mode = #tpu.pipeline_mode<synchronous>, transform_indices = @transform_3, window_bounds = array<i64: 96, 1>}, {pipeline_mode = #tpu.pipeline_mode<synchronous>, transform_indices = @transform_4, window_bounds = array<i64: 96, 1>}, {transform_indices = @transform_5, window_bounds = array<i64: 1, 96, 16>}]} {
    %c0 = arith.constant 0 : index
    %c0_0 = arith.constant 0 : index
    %0 = vector.load %arg3[%c0, %c0_0] : memref<96x48xf32, #tpu.memory_space<vmem>>, vector<96x48xf32>
    %c0_1 = arith.constant 0 : index
    %c0_2 = arith.constant 0 : index
    %c0_3 = arith.constant 0 : index
    %1 = vector.load %arg2[%c0_1, %c0_2, %c0_3] : memref<1x16x48xf32, #tpu.memory_space<vmem>>, vector<1x16x48xf32>
    %2 = vector.shape_cast %1 : vector<1x16x48xf32> to vector<16x48xf32>
    %cst = arith.constant dense<0.000000e+00> : vector<96x16xf32>
    %3 = tpu.matmul %0, %2, %cst {dimension_numbers = #tpu.dot_dimension_numbers<[1], [1], [0], [0], [0, 0, 1, 0], [], []>} : vector<96x48xf32>, vector<16x48xf32>, vector<96x16xf32> -> vector<96x16xf32>
    %c0_4 = arith.constant 0 : index
    %c0_5 = arith.constant 0 : index
    %4 = vector.load %arg4[%c0_4, %c0_5] : memref<96x1xf32, #tpu.memory_space<vmem>>, vector<96x1xf32>
    %5 = vector.broadcast %4 : vector<96x1xf32> to vector<96x16xf32>
    %6 = arith.addf %3, %5 : vector<96x16xf32>
    %cst_6 = arith.constant dense<0.000000e+00> : vector<16xf32>
    %7 = vector.multi_reduction <add>, %6, %cst_6 [0] : vector<96x16xf32> to vector<16xf32>
    %8 = vector.shape_cast %7 : vector<16xf32> to vector<1x16xf32>
    %cst_7 = arith.constant 9.600000e+01 : f32
    %9 = vector.broadcast %cst_7 : f32 to vector<1x16xf32>
    %10 = arith.divf %8, %9 : vector<1x16xf32>
    %11 = vector.broadcast %10 : vector<1x16xf32> to vector<96x16xf32>
    %12 = arith.subf %6, %11 : vector<96x16xf32>
    %13 = arith.mulf %12, %12 : vector<96x16xf32>
    %cst_8 = arith.constant dense<0.000000e+00> : vector<16xf32>
    %14 = vector.multi_reduction <add>, %13, %cst_8 [0] : vector<96x16xf32> to vector<16xf32>
    %15 = vector.shape_cast %14 : vector<16xf32> to vector<1x16xf32>
    %cst_9 = arith.constant 9.600000e+01 : f32
    %16 = vector.broadcast %cst_9 : f32 to vector<1x16xf32>
    %17 = arith.divf %15, %16 : vector<1x16xf32>
    %cst_10 = arith.constant 9.99999974E-6 : f32
    %18 = vector.broadcast %cst_10 : f32 to vector<1x16xf32>
    %19 = arith.addf %17, %18 : vector<1x16xf32>
    %20 = math.rsqrt %19 : vector<1x16xf32>
    %21 = vector.broadcast %20 : vector<1x16xf32> to vector<96x16xf32>
    %22 = arith.mulf %12, %21 : vector<96x16xf32>
    %c0_11 = arith.constant 0 : index
    %c0_12 = arith.constant 0 : index
    %23 = vector.load %arg5[%c0_11, %c0_12] : memref<96x1xf32, #tpu.memory_space<vmem>>, vector<96x1xf32>
    %24 = vector.broadcast %23 : vector<96x1xf32> to vector<96x16xf32>
    %25 = arith.mulf %22, %24 : vector<96x16xf32>
    %c0_13 = arith.constant 0 : index
    %c0_14 = arith.constant 0 : index
    %26 = vector.load %arg6[%c0_13, %c0_14] : memref<96x1xf32, #tpu.memory_space<vmem>>, vector<96x1xf32>
    %27 = vector.broadcast %26 : vector<96x1xf32> to vector<96x16xf32>
    %28 = arith.addf %25, %27 : vector<96x16xf32>
    %c0_15 = arith.constant 0 : index
    %c0_16 = arith.constant 0 : index
    %c0_17 = arith.constant 0 : index
    %29 = vector.load %arg7[%c0_15, %c0_16, %c0_17] : memref<1x96x16xf32, #tpu.memory_space<vmem>>, vector<1x96x16xf32>
    %30 = vector.shape_cast %29 : vector<1x96x16xf32> to vector<96x16xf32>
    %31 = vector.shape_cast %28 : vector<96x16xf32> to vector<1x96x16xf32>
    tpu.vector_store %arg7[%c0_15, %c0_16, %c0_17], %31 {strides = array<i32>} : memref<1x96x16xf32, #tpu.memory_space<vmem>>, vector<1x96x16xf32>,
    return
  }
  func.func @transform_0(%arg0: i32, %arg1: i32) -> (i32, i32, i32) {
    %c0_i32 = arith.constant 0 : i32
    %c0_i32_0 = arith.constant 0 : i32
    return %arg0, %arg1, %c0_i32 : i32, i32, i32
  }
  func.func @transform_1(%arg0: i32, %arg1: i32) -> (i32, i32) {
    %c0_i32 = arith.constant 0 : i32
    %c0_i32_0 = arith.constant 0 : i32
    %c0_i32_1 = arith.constant 0 : i32
    return %c0_i32, %c0_i32_0 : i32, i32
  }
  func.func @transform_2(%arg0: i32, %arg1: i32) -> (i32, i32) {
    %c0_i32 = arith.constant 0 : i32
    %c0_i32_0 = arith.constant 0 : i32
    %c0_i32_1 = arith.constant 0 : i32
    return %c0_i32, %c0_i32_0 : i32, i32
  }
  func.func @transform_3(%arg0: i32, %arg1: i32) -> (i32, i32) {
    %c0_i32 = arith.constant 0 : i32
    %c0_i32_0 = arith.constant 0 : i32
    %c0_i32_1 = arith.constant 0 : i32
    return %c0_i32, %c0_i32_0 : i32, i32
  }
  func.func @transform_4(%arg0: i32, %arg1: i32) -> (i32, i32) {
    %c0_i32 = arith.constant 0 : i32
    %c0_i32_0 = arith.constant 0 : i32
    %c0_i32_1 = arith.constant 0 : i32
    return %c0_i32, %c0_i32_0 : i32, i32
  }
  func.func @transform_5(%arg0: i32, %arg1: i32) -> (i32, i32, i32) {
    %c0_i32 = arith.constant 0 : i32
    %c0_i32_0 = arith.constant 0 : i32
    return %arg0, %c0_i32, %arg1 : i32, i32, i32
  }
}

</mosaic_0001>

<llo_original>
// kernel: patch_embed_forward.1
$region0: #{patch_embed_forward.1}
  #allocation0 [shape = 'u32[]', space=smem, size = 0x4, offset = 0x4, fixed_abs, tag = 'smem constant byte address 0x4 - core index']
  #allocation1 [shape = 'u32[72,128]{1,0:T(1,128)}', space=vmem, size = 0x9000, scoped, tag = 'internal scratch']
  %s0 = inlined_call_operand.vmem [shape: f32[2,16,48], index: 0, kind: input, shape index: {}]
  %s1 = inlined_call_operand.vmem [shape: f32[96,48], index: 1, kind: input, shape index: {}]
  %s2 = inlined_call_operand.vmem [shape: f32[96,1], index: 2, kind: input, shape index: {}]
  %s3 = inlined_call_operand.vmem [shape: f32[96,1], index: 3, kind: input, shape index: {}]
  %s4 = inlined_call_operand.vmem [shape: f32[96,1], index: 4, kind: input, shape index: {}]
  %s5 = inlined_call_operand.vmem [shape: f32[2,96,16], index: 5, kind: output, shape index: {}]
  %s6 = sld [smem:[#allocation0]]
  $region53: #{patch_embed_forward.1} parent=0
    _
  %s8 = ssub.s32 1, %s6
  %s9 = scalar_select 0, %s8, %s6
  loop: start=0, step=1, limit=4
  $region2: #{patch_embed_forward.1} parent=0 // loop_pre_header
    _
  $region3: #{patch_embed_forward.1} parent=0 // loop_header
    %s11 = sphi 0, %s15
    %p12 = scmp.ge.s32.totalorder %s11, 4
    %s18 = sphi 0, %s30
    %s19 = sphi 0, %s26
    %s20 = sphi 0, %s18
    %s21 = sphi 0, %s19
    %s22 = sphi 0, %s20
    %s23 = sphi 0, %s21
    %s35 = sphi 0, %s37
    %s38 = sphi 0, %s35
    %s39 = sphi 0, %s38
    %s55 = sphi 0, %s39
    %s59 = sphi 0, %s59
    %s61 = sphi 0, %s59
    %s62 = sphi 0, %s61
    %s76 = sphi 0, %s62
    %s80 = sphi 0, %s80
    %s82 = sphi 0, %s80
    %s83 = sphi 0, %s82
    %s97 = sphi 0, %s83
    %s101 = sphi 0, %s101
    %s103 = sphi 0, %s101
    %s104 = sphi 0, %s103
    %s118 = sphi 0, %s104
    %s122 = sphi 0, %s122
    %s124 = sphi 0, %s122
    %s125 = sphi 0, %s124
    %s139 = sphi 0, %s125
    %s147 = sphi 0, %s149
    %s150 = sphi 0, %s147
    %s151 = sphi 0, %s150
    %s167 = sphi 0, %s151
  $region4: #{patch_embed_forward.1} parent=0 // loop_header_branch
    %14 = sbr.rel (%p12) target = $region8
  $region5: #{patch_embed_forward.1} parent=0 // loop_body
    %s16 = ssub.s32 %s11, 1
    %s17 = ssub.s32 %s11, 2
    %s24 = sadd.s32 1, %s19
    %p25 = scmp.ge.s32.totalorder %s24, 1
    %s26 = scalar_select %p25, 0, %s24
    %s27 = sadd.s32 1, %s18
    %s28 = scalar_select %p25, %s27, %s18
    %p29 = scmp.ge.s32.totalorder %s28, 2
    %s30 = scalar_select %p29, 0, %s28
    %s31 = ssub.s32 %s18, %s30
    %s32 = ssub.s32 %s19, %s26
    %s33 = sor.u32 %s31, %s32
    %p34 = scmp.eq.s32.totalorder %s33, 0
    %s36 = sadd.s32 %s35, 1
    %s37 = scalar_select %p34, %s35, %s36
    %p40 = pneg %p34
    %p41 = scmp.eq.s32.totalorder %s11, 1
    %p42 = por %p40, %p41
    %p43 = scmp.ne.s32.totalorder %s35, %s38
    %p44 = scmp.eq.s32.totalorder %s11, 0
    %p45 = por %p43, %p44
    %p46 = scmp.ne.s32.totalorder %s35, %s38
    %p47 = scmp.eq.s32.totalorder %s16, 1
    %p48 = por %p46, %p47
    %p49 = scmp.ne.s32.totalorder %s38, %s39
    %p50 = scmp.eq.s32.totalorder %s16, 0
    %p51 = por %p49, %p50
    %p52 = scmp.ne.s32.totalorder %s38, %s39
    %p53 = scmp.eq.s32.totalorder %s17, 1
    %p54 = por %p52, %p53
    %p56 = scmp.ne.s32.totalorder %s39, %s55
    %p57 = scmp.eq.s32.totalorder %s17, 0
    %p58 = por %p56, %p57
    %s60 = sadd.s32 %s59, 1
    %p63 = scmp.eq.s32.totalorder %s11, 1
    %p64 = scmp.ne.s32.totalorder %s59, %s61
    %p65 = scmp.eq.s32.totalorder %s11, 0
    %p66 = por %p64, %p65
    %p67 = scmp.ne.s32.totalorder %s59, %s61
    %p68 = scmp.eq.s32.totalorder %s16, 1
    %p69 = por %p67, %p68
    %p70 = scmp.ne.s32.totalorder %s61, %s62
    %p71 = scmp.eq.s32.totalorder %s16, 0
    %p72 = por %p70, %p71
    %p73 = scmp.ne.s32.totalorder %s61, %s62
    %p74 = scmp.eq.s32.totalorder %s17, 1
    %p75 = por %p73, %p74
    %p77 = scmp.ne.s32.totalorder %s62, %s76
    %p78 = scmp.eq.s32.totalorder %s17, 0
    %p79 = por %p77, %p78
    %s81 = sadd.s32 %s80, 1
    %p84 = scmp.eq.s32.totalorder %s11, 1
    %p85 = scmp.ne.s32.totalorder %s80, %s82
    %p86 = scmp.eq.s32.totalorder %s11, 0
    %p87 = por %p85, %p86
    %p88 = scmp.ne.s32.totalorder %s80, %s82
    %p89 = scmp.eq.s32.totalorder %s16, 1
    %p90 = por %p88, %p89
    %p91 = scmp.ne.s32.totalorder %s82, %s83
    %p92 = scmp.eq.s32.totalorder %s16, 0
    %p93 = por %p91, %p92
    %p94 = scmp.ne.s32.totalorder %s82, %s83
    %p95 = scmp.eq.s32.totalorder %s17, 1
    %p96 = por %p94, %p95
    %p98 = scmp.ne.s32.totalorder %s83, %s97
    %p99 = scmp.eq.s32.totalorder %s17, 0
    %p100 = por %p98, %p99
    %s102 = sadd.s32 %s101, 1
    %p105 = scmp.eq.s32.totalorder %s11, 1
    %p106 = scmp.ne.s32.totalorder %s101, %s103
    %p107 = scmp.eq.s32.totalorder %s11, 0
    %p108 = por %p106, %p107
    %p109 = scmp.ne.s32.totalorder %s101, %s103
    %p110 = scmp.eq.s32.totalorder %s16, 1
    %p111 = por %p109, %p110
    %p112 = scmp.ne.s32.totalorder %s103, %s104
    %p113 = scmp.eq.s32.totalorder %s16, 0
    %p114 = por %p112, %p113
    %p115 = scmp.ne.s32.totalorder %s103, %s104
    %p116 = scmp.eq.s32.totalorder %s17, 1
    %p117 = por %p115, %p116
    %p119 = scmp.ne.s32.totalorder %s104, %s118
    %p120 = scmp.eq.s32.totalorder %s17, 0
    %p121 = por %p119, %p120
    %s123 = sadd.s32 %s122, 1
    %p126 = scmp.eq.s32.totalorder %s11, 1
    %p127 = scmp.ne.s32.totalorder %s122, %s124
    %p128 = scmp.eq.s32.totalorder %s11, 0
    %p129 = por %p127, %p128
    %p130 = scmp.ne.s32.totalorder %s122, %s124
    %p131 = scmp.eq.s32.totalorder %s16, 1
    %p132 = por %p130, %p131
    %p133 = scmp.ne.s32.totalorder %s124, %s125
    %p134 = scmp.eq.s32.totalorder %s16, 0
    %p135 = por %p133, %p134
    %p136 = scmp.ne.s32.totalorder %s124, %s125
    %p137 = scmp.eq.s32.totalorder %s17, 1
    %p138 = por %p136, %p137
    %p140 = scmp.ne.s32.totalorder %s125, %s139
    %p141 = scmp.eq.s32.totalorder %s17, 0
    %p142 = por %p140, %p141
    %s143 = ssub.s32 %s18, %s30
    %s144 = ssub.s32 %s19, %s26
    %s145 = sor.u32 %s143, %s144
    %p146 = scmp.eq.s32.totalorder %s145, 0
    %s148 = sadd.s32 %s147, 1
    %s149 = scalar_select %p146, %s147, %s148
    %p152 = pneg %p146
    %p153 = scmp.eq.s32.totalorder %s11, 1
    %p154 = por %p152, %p153
    %p155 = scmp.ne.s32.totalorder %s147, %s150
    %p156 = scmp.eq.s32.totalorder %s11, 0
    %p157 = por %p155, %p156
    %p158 = scmp.ne.s32.totalorder %s147, %s150
    %p159 = scmp.eq.s32.totalorder %s16, 1
    %p160 = por %p158, %p159
    %p161 = scmp.ne.s32.totalorder %s150, %s151
    %p162 = scmp.eq.s32.totalorder %s16, 0
    %p163 = por %p161, %p162
    %p164 = scmp.ne.s32.totalorder %s150, %s151
    %p165 = scmp.eq.s32.totalorder %s17, 1
    %p166 = por %p164, %p165
    %p168 = scmp.ne.s32.totalorder %s151, %s167
    %p169 = scmp.eq.s32.totalorder %s17, 0
    %p170 = por %p168, %p169
    %p171 = scmp.le.s32.totalorder 1, %s11
    %p172 = scmp.lt.s32.totalorder %s11, 3
    %p173 = pnand %p171, %p172
    %p174 = pneg %p173
    // Predicated region
    $region9: #{patch_embed_forward.1} parent=5 // pred_check
      _
    $region10: #{patch_embed_forward.1} parent=5 // pred_check_branch
      %176 = sbr.rel (%p173) target = $region12
    $region11: #{patch_embed_forward.1} parent=5 // pred_region
      %s177 = ssub.s32 %s11, 1
      // Predicated region
      $region13: #{patch_embed_forward.1} parent=11 // pred_check
        %p178 = pneg %p72
      $region14: #{patch_embed_forward.1} parent=11 // pred_check_branch
        %180 = sbr.rel (%p178) target = $region16
      $region15: #{patch_embed_forward.1} parent=11 // pred_region
        _
      $region16: #{patch_embed_forward.1} parent=11 // pred_fallthru
        _
      // Predicated region
      $region17: #{patch_embed_forward.1} parent=11 // pred_check
        %p181 = pneg %p93
      $region18: #{patch_embed_forward.1} parent=11 // pred_check_branch
        %183 = sbr.rel (%p181) target = $region20
      $region19: #{patch_embed_forward.1} parent=11 // pred_region
        _
      $region20: #{patch_embed_forward.1} parent=11 // pred_fallthru
        _
      // Predicated region
      $region21: #{patch_embed_forward.1} parent=11 // pred_check
        %p184 = pneg %p114
      $region22: #{patch_embed_forward.1} parent=11 // pred_check_branch
        %186 = sbr.rel (%p184) target = $region24
      $region23: #{patch_embed_forward.1} parent=11 // pred_region
        _
      $region24: #{patch_embed_forward.1} parent=11 // pred_fallthru
        _
      // Predicated region
      $region25: #{patch_embed_forward.1} parent=11 // pred_check
        %p187 = pneg %p135
      $region26: #{patch_embed_forward.1} parent=11 // pred_check_branch
        %189 = sbr.rel (%p187) target = $region28
      $region27: #{patch_embed_forward.1} parent=11 // pred_region
        _
      $region28: #{patch_embed_forward.1} parent=11 // pred_fallthru
        _
    $region12: #{patch_embed_forward.1} parent=5 // pred_fallthru
      _
    %p190 = scmp.lt.s32.totalorder %s11, 2
    // Predicated region
    $region29: #{patch_embed_forward.1} parent=5 // pred_check
      %p191 = pneg %p190
    $region30: #{patch_embed_forward.1} parent=5 // pred_check_branch
      %193 = sbr.rel (%p191) target = $region32
    $region31: #{patch_embed_forward.1} parent=5 // pred_region
      // Predicated region
      $region33: #{patch_embed_forward.1} parent=31 // pred_check
        %p194 = pneg %p45
      $region34: #{patch_embed_forward.1} parent=31 // pred_check_branch
        %196 = sbr.rel (%p194) target = $region36
      $region35: #{patch_embed_forward.1} parent=31 // pred_region
        %s197 = smul.u32 2, %s19
        %p198 = scmp.lt.s32.totalorder %s18, 1
        %s199 = scalar_select %p198, %s18, 1
        %p200 = scmp.lt.s32.totalorder %s197, 1
        %s201 = scalar_select %p200, %s197, 1
        %s202 = smul.addr %s199, 2
        %s203 = sadd.s32 %s201, %s202
        %s204 = smul.addr %s203, 8
        %s205 = scalar_lea.vmem %s0, %s204
        %s206 = smul.u32 2, %s19
      $region36: #{patch_embed_forward.1} parent=31 // pred_fallthru
        _
    $region32: #{patch_embed_forward.1} parent=5 // pred_fallthru
      _
    %p207 = scmp.le.s32.totalorder 1, %s11
    %p208 = scmp.lt.s32.totalorder %s11, 3
    %p209 = pnand %p207, %p208
    %p210 = pneg %p209
    // Predicated region
    $region37: #{patch_embed_forward.1} parent=5 // pred_check
      _
    $region38: #{patch_embed_forward.1} parent=5 // pred_check_branch
      %212 = sbr.rel (%p209) target = $region40
    $region39: #{patch_embed_forward.1} parent=5 // pred_region
      %s213 = ssub.s32 %s11, 1
      %s214 = smul.u32 2, %s21
      %p215 = scmp.lt.s32.totalorder %s20, 1
      %s216 = scalar_select %p215, %s20, 1
      %p217 = scmp.lt.s32.totalorder %s214, 1
      %s218 = scalar_select %p217, %s214, 1
      %s219 = smul.addr %s216, 2
      %s220 = sadd.s32 %s218, %s219
      %s221 = smul.addr %s220, 8
      %s222 = scalar_lea.vmem %s0, %s221
      %p223 = pneg %p51
      %p224 = pneg %p48
      %p225 = pneg %p72
      %p226 = pneg %p69
      %p227 = pneg %p93
      %p228 = pneg %p90
      %p229 = pneg %p114
      %p230 = pneg %p111
      %p231 = pneg %p135
      %p232 = pneg %p132
      %p233 = pneg %p163
      %p234 = pneg %p160
      %p235 = scmp.lt.s32.totalorder %s20, 1
      %s236 = scalar_select %p235, %s20, 1
      %p237 = scmp.lt.s32.totalorder %s21, 0
      %s238 = scalar_select %p237, %s21, 0
      %s239 = smul.addr %s236, 12
      %s240 = sadd.s32 %s238, %s239
      %s241 = smul.addr %s240, 8
      %s242 = scalar_lea.vmem %s5, %s241
      %s243 = smul.u32 2, %s21
      %p244 = scmp.lt.s32.totalorder %s20, 1
      %s245 = scalar_select %p244, %s20, 1
      %p246 = scmp.lt.s32.totalorder %s243, 1
      %s247 = scalar_select %p246, %s243, 1
      %s248 = smul.addr %s245, 2
      %s249 = sadd.s32 %s247, %s248
      %s250 = smul.addr %s249, 8
      %s251 = scalar_lea.vmem %s0, %s250
      %s252 = smul.u32 2, %s21
      %p253 = scmp.lt.s32.totalorder %s20, 1
      %s254 = scalar_select %p253, %s20, 1
      %p255 = scmp.lt.s32.totalorder %s21, 0
      %s256 = scalar_select %p255, %s21, 0
      %s257 = smul.addr %s254, 12
      %s258 = sadd.s32 %s256, %s257
      %s259 = smul.addr %s258, 8
      %s260 = scalar_lea.vmem %s5, %s259
      %v261 = vld [vmem:[%s1] sm:$0xff]
      %v262 = vld [vmem:[%s1 + $0x8] sm:$0xff]
      %v263 = vld [vmem:[%s1 + $0x10] sm:$0xff]
      %v264 = vld [vmem:[%s1 + $0x18] sm:$0xff]
      %v265 = vld [vmem:[%s1 + $0x20] sm:$0xff]
      %v266 = vld [vmem:[%s1 + $0x28] sm:$0xff]
      %v267 = vld [vmem:[%s1 + $0x30] sm:$0xff]
      %v268 = vld [vmem:[%s1 + $0x38] sm:$0xff]
      %v269 = vld [vmem:[%s1 + $0x40] sm:$0xff]
      %v270 = vld [vmem:[%s1 + $0x48] sm:$0xff]
      %v271 = vld [vmem:[%s1 + $0x50] sm:$0xff]
      %v272 = vld [vmem:[%s1 + $0x58] sm:$0xff]
      %v273 = vld [vmem:[%s251] sm:$0xff]
      %v274 = vld [vmem:[%s251 + $0x8] sm:$0xff]
      %v275 = vld [vmem:[%s2] sm:$0xff]
      %v276 = vld [vmem:[%s2 + $0x8] sm:$0xff]
      %v277 = vld [vmem:[%s2 + $0x10] sm:$0xff]
      %v278 = vld [vmem:[%s2 + $0x18] sm:$0xff]
      %v279 = vld [vmem:[%s2 + $0x20] sm:$0xff]
      %v280 = vld [vmem:[%s2 + $0x28] sm:$0xff]
      %v281 = vld [vmem:[%s2 + $0x30] sm:$0xff]
      %v282 = vld [vmem:[%s2 + $0x38] sm:$0xff]
      %v283 = vld [vmem:[%s2 + $0x40] sm:$0xff]
      %v284 = vld [vmem:[%s2 + $0x48] sm:$0xff]
      %v285 = vld [vmem:[%s2 + $0x50] sm:$0xff]
      %v286 = vld [vmem:[%s2 + $0x58] sm:$0xff]
      %288 = vset.pattern.permute.xlu0 0
      %289 = vperm.xlu0 %288, %v275
      %v290 = vpop.permute.xlu0 %289
      %293 = vset.pattern.permute.xlu0 0
      %294 = vperm.xlu0 %293, %v276
      %v295 = vpop.permute.xlu0 %294
      %298 = vset.pattern.permute.xlu0 0
      %299 = vperm.xlu0 %298, %v277
      %v300 = vpop.permute.xlu0 %299
      %303 = vset.pattern.permute.xlu0 0
      %304 = vperm.xlu0 %303, %v278
      %v305 = vpop.permute.xlu0 %304
      %308 = vset.pattern.permute.xlu0 0
      %309 = vperm.xlu0 %308, %v279
      %v310 = vpop.permute.xlu0 %309
      %313 = vset.pattern.permute.xlu0 0
      %314 = vperm.xlu0 %313, %v280
      %v315 = vpop.permute.xlu0 %314
      %318 = vset.pattern.permute.xlu0 0
      %319 = vperm.xlu0 %318, %v281
      %v320 = vpop.permute.xlu0 %319
      %323 = vset.pattern.permute.xlu0 0
      %324 = vperm.xlu0 %323, %v282
      %v325 = vpop.permute.xlu0 %324
      %328 = vset.pattern.permute.xlu0 0
      %329 = vperm.xlu0 %328, %v283
      %v330 = vpop.permute.xlu0 %329
      %333 = vset.pattern.permute.xlu0 0
      %334 = vperm.xlu0 %333, %v284
      %v335 = vpop.permute.xlu0 %334
      %338 = vset.pattern.permute.xlu0 0
      %339 = vperm.xlu0 %338, %v285
      %v340 = vpop.permute.xlu0 %339
      %343 = vset.pattern.permute.xlu0 0
      %344 = vperm.xlu0 %343, %v286
      %v345 = vpop.permute.xlu0 %344
      %vm347 = vcmask 392192
      %v349 = vsel %vm347, %v261, 0
      %v352 = vsel %vm347, %v262, 0
      %v355 = vsel %vm347, %v263, 0
      %v358 = vsel %vm347, %v264, 0
      %v361 = vsel %vm347, %v265, 0
      %v364 = vsel %vm347, %v266, 0
      %v367 = vsel %vm347, %v267, 0
      %v370 = vsel %vm347, %v268, 0
      %v373 = vsel %vm347, %v269, 0
      %v376 = vsel %vm347, %v270, 0
      %v379 = vsel %vm347, %v271, 0
      %v382 = vsel %vm347, %v272, 0
      %v385 = vsel %vm347, %v273, 0
      %v388 = vsel %vm347, %v274, 0
      %390 = vmatpush.xpose.msra.mxu0 0.0
      %391 = vmatpush.xpose.msra.mxu0 0.0
      %392 = vmatpush.xpose.msra.mxu0 0.0
      %393 = vmatpush.xpose.msra.mxu0 0.0
      %394 = vmatpush.xpose.msra.mxu0 0.0
      %395 = vmatpush.xpose.msra.mxu0 0.0
      %396 = vmatpush.xpose.msra.mxu0 0.0
      %397 = vmatpush.xpose.msra.mxu0 0.0
      %398 = vmatpush.xpose.msra.mxu0 0.0
      %399 = vmatpush.xpose.msra.mxu0 0.0
      %400 = vmatpush.xpose.msra.mxu0 0.0
      %401 = vmatpush.xpose.msra.mxu0 0.0
      %402 = vmatpush.xpose.msra.mxu0 0.0
      %403 = vmatpush.xpose.msra.mxu0 0.0
      %404 = vmatpush.xpose.msra.mxu0 %v388
      %405 = vmatpush.xpose.msra.mxu0 %v385
      %406 = vmatmul.f32.gmra.mxu0 %v349
      %v407 = vpop.f32.mrf.mxu0
      %v408 = vadd.f32 %v290, %v407
      %409 = vmatmul.f32.gmra.mxu0 %v352
      %v410 = vpop.f32.mrf.mxu0
      %v411 = vadd.f32 %v295, %v410
      %412 = vmatmul.f32.gmra.mxu0 %v355
      %v413 = vpop.f32.mrf.mxu0
      %v414 = vadd.f32 %v300, %v413
      %415 = vmatmul.f32.gmra.mxu0 %v358
      %v416 = vpop.f32.mrf.mxu0
      %v417 = vadd.f32 %v305, %v416
      %418 = vmatmul.f32.gmra.mxu0 %v361
      %v419 = vpop.f32.mrf.mxu0
      %v420 = vadd.f32 %v310, %v419
      %421 = vmatmul.f32.gmra.mxu0 %v364
      %v422 = vpop.f32.mrf.mxu0
      %v423 = vadd.f32 %v315, %v422
      %424 = vmatmul.f32.gmra.mxu0 %v367
      %v425 = vpop.f32.mrf.mxu0
      %v426 = vadd.f32 %v320, %v425
      %427 = vmatmul.f32.gmra.mxu0 %v370
      %v428 = vpop.f32.mrf.mxu0
      %v429 = vadd.f32 %v325, %v428
      %430 = vmatmul.f32.gmra.mxu0 %v373
      %v431 = vpop.f32.mrf.mxu0
      %v432 = vadd.f32 %v330, %v431
      %433 = vmatmul.f32.gmra.mxu0 %v376
      %v434 = vpop.f32.mrf.mxu0
      %v435 = vadd.f32 %v335, %v434
      %436 = vmatmul.f32.gmra.mxu0 %v379
      %v437 = vpop.f32.mrf.mxu0
      %v438 = vadd.f32 %v340, %v437
      %439 = vmatmul.f32.gmra.mxu0 %v382
      %v440 = vpop.f32.mrf.mxu0
      %v441 = vadd.f32 %v345, %v440
      %442 = vdwg.mxu0
      %vm443 = vcmask 130048
      %v444 = vsel %vm443, %v408, 0.0
      %v445 = vsel %vm443, %v411, 0.0
      %v446 = vadd.f32 %v444, %v445
      %v447 = vsel %vm443, %v414, 0.0
      %v448 = vadd.f32 %v446, %v447
      %v449 = vsel %vm443, %v417, 0.0
      %v450 = vadd.f32 %v448, %v449
      %v451 = vsel %vm443, %v420, 0.0
      %v452 = vadd.f32 %v450, %v451
      %v453 = vsel %vm443, %v423, 0.0
      %v454 = vadd.f32 %v452, %v453
      %v455 = vsel %vm443, %v426, 0.0
      %v456 = vadd.f32 %v454, %v455
      %v457 = vsel %vm443, %v429, 0.0
      %v458 = vadd.f32 %v456, %v457
      %v459 = vsel %vm443, %v432, 0.0
      %v460 = vadd.f32 %v458, %v459
      %v461 = vsel %vm443, %v435, 0.0
      %v462 = vadd.f32 %v460, %v461
      %v463 = vsel %vm443, %v438, 0.0
      %v464 = vadd.f32 %v462, %v463
      %v465 = vsel %vm443, %v441, 0.0
      %v466 = vadd.f32 %v464, %v465
      %v467 = vrot.slane %v466, 4
      %v468 = vadd.f32 %v466, %v467
      %v469 = vrot.slane %v468, 2
      %v470 = vadd.f32 %v468, %v469
      %v471 = vrot.slane %v470, 1
      %v472 = vadd.f32 %v470, %v471
      %v473 = vrcp.pop 96.0
      %v474 = vmul.f32 96.0, %v473
      %v475 = vsub.f32 1.0, %v474
      %v476 = vmul.f32 %v473, %v475
      %v477 = vadd.f32 %v473, %v476
      %vm478 = vweird.f32 %v473
      %v479 = vsel %vm478, %v473, %v477
      %v480 = vmul.f32 %v472, %v479
      %v481 = vsub.f32 %v408, %v480
      %v482 = vsub.f32 %v411, %v480
      %v483 = vsub.f32 %v414, %v480
      %v484 = vsub.f32 %v417, %v480
      %v485 = vsub.f32 %v420, %v480
      %v486 = vsub.f32 %v423, %v480
      %v487 = vsub.f32 %v426, %v480
      %v488 = vsub.f32 %v429, %v480
      %v489 = vsub.f32 %v432, %v480
      %v490 = vsub.f32 %v435, %v480
      %v491 = vsub.f32 %v438, %v480
      %v492 = vsub.f32 %v441, %v480
      %v493 = vmul.f32 %v481, %v481
      %v494 = vmul.f32 %v482, %v482
      %v495 = vmul.f32 %v483, %v483
      %v496 = vmul.f32 %v484, %v484
      %v497 = vmul.f32 %v485, %v485
      %v498 = vmul.f32 %v486, %v486
      %v499 = vmul.f32 %v487, %v487
      %v500 = vmul.f32 %v488, %v488
      %v501 = vmul.f32 %v489, %v489
      %v502 = vmul.f32 %v490, %v490
      %v503 = vmul.f32 %v491, %v491
      %v504 = vmul.f32 %v492, %v492
      %v505 = vsel %vm443, %v493, 0.0
      %v506 = vsel %vm443, %v494, 0.0
      %v507 = vadd.f32 %v505, %v506
      %v508 = vsel %vm443, %v495, 0.0
      %v509 = vadd.f32 %v507, %v508
      %v510 = vsel %vm443, %v496, 0.0
      %v511 = vadd.f32 %v509, %v510
      %v512 = vsel %vm443, %v497, 0.0
      %v513 = vadd.f32 %v511, %v512
      %v514 = vsel %vm443, %v498, 0.0
      %v515 = vadd.f32 %v513, %v514
      %v516 = vsel %vm443, %v499, 0.0
      %v517 = vadd.f32 %v515, %v516
      %v518 = vsel %vm443, %v500, 0.0
      %v519 = vadd.f32 %v517, %v518
      %v520 = vsel %vm443, %v501, 0.0
      %v521 = vadd.f32 %v519, %v520
      %v522 = vsel %vm443, %v502, 0.0
      %v523 = vadd.f32 %v521, %v522
      %v524 = vsel %vm443, %v503, 0.0
      %v525 = vadd.f32 %v523, %v524
      %v526 = vsel %vm443, %v504, 0.0
      %v527 = vadd.f32 %v525, %v526
      %v528 = vrot.slane %v527, 4
      %v529 = vadd.f32 %v527, %v528
      %v530 = vrot.slane %v529, 2
      %v531 = vadd.f32 %v529, %v530
      %v532 = vrot.slane %v531, 1
      %v533 = vadd.f32 %v531, %v532
      %v534 = vmul.f32 %v533, %v479
      %v535 = vadd.f32 %v534, 1e-05
      %v536 = vrsqrt.pop %v535
      %v537 = vmul.f32 %v536, %v535
      %v538 = vmul.f32 %v537, %v536
      %v539 = vmul.f32 0.5, %v538
      %v540 = vsub.f32 1.5, %v539
      %v541 = vmul.f32 %v536, %v540
      %vm542 = vweird.f32 %v535
      %vm543 = vweird.f32 %v536
      %vm544 = vmor %vm542, %vm543
      %v545 = vsel %vm544, %v536, %v541
      %v546 = vmul.f32 %v481, %v545
      %v547 = vmul.f32 %v482, %v545
      %v548 = vmul.f32 %v483, %v545
      %v549 = vmul.f32 %v484, %v545
      %v550 = vmul.f32 %v485, %v545
      %v551 = vmul.f32 %v486, %v545
      %v552 = vmul.f32 %v487, %v545
      %v553 = vmul.f32 %v488, %v545
      %v554 = vmul.f32 %v489, %v545
      %v555 = vmul.f32 %v490, %v545
      %v556 = vmul.f32 %v491, %v545
      %v557 = vmul.f32 %v492, %v545
      %v558 = vld [vmem:[%s3] sm:$0xff]
      %v559 = vld [vmem:[%s3 + $0x8] sm:$0xff]
      %v560 = vld [vmem:[%s3 + $0x10] sm:$0xff]
      %v561 = vld [vmem:[%s3 + $0x18] sm:$0xff]
      %v562 = vld [vmem:[%s3 + $0x20] sm:$0xff]
      %v563 = vld [vmem:[%s3 + $0x28] sm:$0xff]
      %v564 = vld [vmem:[%s3 + $0x30] sm:$0xff]
      %v565 = vld [vmem:[%s3 + $0x38] sm:$0xff]
      %v566 = vld [vmem:[%s3 + $0x40] sm:$0xff]
      %v567 = vld [vmem:[%s3 + $0x48] sm:$0xff]
      %v568 = vld [vmem:[%s3 + $0x50] sm:$0xff]
      %v569 = vld [vmem:[%s3 + $0x58] sm:$0xff]
      %571 = vset.pattern.permute.xlu0 0
      %572 = vperm.xlu0 %571, %v558
      %v573 = vpop.permute.xlu0 %572
      %576 = vset.pattern.permute.xlu0 0
      %577 = vperm.xlu0 %576, %v559
      %v578 = vpop.permute.xlu0 %577
      %581 = vset.pattern.permute.xlu0 0
      %582 = vperm.xlu0 %581, %v560
      %v583 = vpop.permute.xlu0 %582
      %586 = vset.pattern.permute.xlu0 0
      %587 = vperm.xlu0 %586, %v561
      %v588 = vpop.permute.xlu0 %587
      %591 = vset.pattern.permute.xlu0 0
      %592 = vperm.xlu0 %591, %v562
      %v593 = vpop.permute.xlu0 %592
      %596 = vset.pattern.permute.xlu0 0
      %597 = vperm.xlu0 %596, %v563
      %v598 = vpop.permute.xlu0 %597
      %601 = vset.pattern.permute.xlu0 0
      %602 = vperm.xlu0 %601, %v564
      %v603 = vpop.permute.xlu0 %602
      %606 = vset.pattern.permute.xlu0 0
      %607 = vperm.xlu0 %606, %v565
      %v608 = vpop.permute.xlu0 %607
      %611 = vset.pattern.permute.xlu0 0
      %612 = vperm.xlu0 %611, %v566
      %v613 = vpop.permute.xlu0 %612
      %616 = vset.pattern.permute.xlu0 0
      %617 = vperm.xlu0 %616, %v567
      %v618 = vpop.permute.xlu0 %617
      %621 = vset.pattern.permute.xlu0 0
      %622 = vperm.xlu0 %621, %v568
      %v623 = vpop.permute.xlu0 %622
      %626 = vset.pattern.permute.xlu0 0
      %627 = vperm.xlu0 %626, %v569
      %v628 = vpop.permute.xlu0 %627
      %v630 = vmul.f32 %v546, %v573
      %v631 = vmul.f32 %v547, %v578
      %v632 = vmul.f32 %v548, %v583
      %v633 = vmul.f32 %v549, %v588
      %v634 = vmul.f32 %v550, %v593
      %v635 = vmul.f32 %v551, %v598
      %v636 = vmul.f32 %v552, %v603
      %v637 = vmul.f32 %v553, %v608
      %v638 = vmul.f32 %v554, %v613
      %v639 = vmul.f32 %v555, %v618
      %v640 = vmul.f32 %v556, %v623
      %v641 = vmul.f32 %v557, %v628
      %v642 = vld [vmem:[%s4] sm:$0xff]
      %v643 = vld [vmem:[%s4 + $0x8] sm:$0xff]
      %v644 = vld [vmem:[%s4 + $0x10] sm:$0xff]
      %v645 = vld [vmem:[%s4 + $0x18] sm:$0xff]
      %v646 = vld [vmem:[%s4 + $0x20] sm:$0xff]
      %v647 = vld [vmem:[%s4 + $0x28] sm:$0xff]
      %v648 = vld [vmem:[%s4 + $0x30] sm:$0xff]
      %v649 = vld [vmem:[%s4 + $0x38] sm:$0xff]
      %v650 = vld [vmem:[%s4 + $0x40] sm:$0xff]
      %v651 = vld [vmem:[%s4 + $0x48] sm:$0xff]
      %v652 = vld [vmem:[%s4 + $0x50] sm:$0xff]
      %v653 = vld [vmem:[%s4 + $0x58] sm:$0xff]
      %655 = vset.pattern.permute.xlu0 0
      %656 = vperm.xlu0 %655, %v642
      %v657 = vpop.permute.xlu0 %656
      %660 = vset.pattern.permute.xlu0 0
      %661 = vperm.xlu0 %660, %v643
      %v662 = vpop.permute.xlu0 %661
      %665 = vset.pattern.permute.xlu0 0
      %666 = vperm.xlu0 %665, %v644
      %v667 = vpop.permute.xlu0 %666
      %670 = vset.pattern.permute.xlu0 0
      %671 = vperm.xlu0 %670, %v645
      %v672 = vpop.permute.xlu0 %671
      %675 = vset.pattern.permute.xlu0 0
      %676 = vperm.xlu0 %675, %v646
      %v677 = vpop.permute.xlu0 %676
      %680 = vset.pattern.permute.xlu0 0
      %681 = vperm.xlu0 %680, %v647
      %v682 = vpop.permute.xlu0 %681
      %685 = vset.pattern.permute.xlu0 0
      %686 = vperm.xlu0 %685, %v648
      %v687 = vpop.permute.xlu0 %686
      %690 = vset.pattern.permute.xlu0 0
      %691 = vperm.xlu0 %690, %v649
      %v692 = vpop.permute.xlu0 %691
      %695 = vset.pattern.permute.xlu0 0
      %696 = vperm.xlu0 %695, %v650
      %v697 = vpop.permute.xlu0 %696
      %700 = vset.pattern.permute.xlu0 0
      %701 = vperm.xlu0 %700, %v651
      %v702 = vpop.permute.xlu0 %701
      %705 = vset.pattern.permute.xlu0 0
      %706 = vperm.xlu0 %705, %v652
      %v707 = vpop.permute.xlu0 %706
      %710 = vset.pattern.permute.xlu0 0
      %711 = vperm.xlu0 %710, %v653
      %v712 = vpop.permute.xlu0 %711
      %v714 = vadd.f32 %v630, %v657
      %v715 = vadd.f32 %v631, %v662
      %v716 = vadd.f32 %v632, %v667
      %v717 = vadd.f32 %v633, %v672
      %v718 = vadd.f32 %v634, %v677
      %v719 = vadd.f32 %v635, %v682
      %v720 = vadd.f32 %v636, %v687
      %v721 = vadd.f32 %v637, %v692
      %v722 = vadd.f32 %v638, %v697
      %v723 = vadd.f32 %v639, %v702
      %v724 = vadd.f32 %v640, %v707
      %v725 = vadd.f32 %v641, %v712
      %726 = vst.msk [vmem:[%s260] sm:$0xff] %vm443, %v714
      %727 = vst.msk [vmem:[%s260 + $0x8] sm:$0xff] %vm443, %v715
      %728 = vst.msk [vmem:[%s260 + $0x10] sm:$0xff] %vm443, %v716
      %729 = vst.msk [vmem:[%s260 + $0x18] sm:$0xff] %vm443, %v717
      %730 = vst.msk [vmem:[%s260 + $0x20] sm:$0xff] %vm443, %v718
      %731 = vst.msk [vmem:[%s260 + $0x28] sm:$0xff] %vm443, %v719
      %732 = vst.msk [vmem:[%s260 + $0x30] sm:$0xff] %vm443, %v720
      %733 = vst.msk [vmem:[%s260 + $0x38] sm:$0xff] %vm443, %v721
      %734 = vst.msk [vmem:[%s260 + $0x40] sm:$0xff] %vm443, %v722
      %735 = vst.msk [vmem:[%s260 + $0x48] sm:$0xff] %vm443, %v723
      %736 = vst.msk [vmem:[%s260 + $0x50] sm:$0xff] %vm443, %v724
      %737 = vst.msk [vmem:[%s260 + $0x58] sm:$0xff] %vm443, %v725
      %p738 = scmp.lt.s32.totalorder %s20, 1
      %s739 = scalar_select %p738, %s20, 1
      %p740 = scmp.lt.s32.totalorder %s21, 0
      %s741 = scalar_select %p740, %s21, 0
      %s742 = smul.addr %s739, 12
      %s743 = sadd.s32 %s741, %s742
      %s744 = smul.addr %s743, 8
      %s745 = scalar_lea.vmem %s5, %s744
      // Predicated region
      $region41: #{patch_embed_forward.1} parent=39 // pred_check
        %p746 = pneg %p160
      $region42: #{patch_embed_forward.1} parent=39 // pred_check_branch
        %748 = sbr.rel (%p746) target = $region44
      $region43: #{patch_embed_forward.1} parent=39 // pred_region
        _
      $region44: #{patch_embed_forward.1} parent=39 // pred_fallthru
        _
    $region40: #{patch_embed_forward.1} parent=5 // pred_fallthru
      _
    %p749 = scmp.le.s32.totalorder 2, %s11
    // Predicated region
    $region45: #{patch_embed_forward.1} parent=5 // pred_check
      %p750 = pneg %p749
    $region46: #{patch_embed_forward.1} parent=5 // pred_check_branch
      %752 = sbr.rel (%p750) target = $region48
    $region47: #{patch_embed_forward.1} parent=5 // pred_region
      %s753 = ssub.s32 %s11, 2
      // Predicated region
      $region49: #{patch_embed_forward.1} parent=47 // pred_check
        %p754 = pneg %p166
      $region50: #{patch_embed_forward.1} parent=47 // pred_check_branch
        %756 = sbr.rel (%p754) target = $region52
      $region51: #{patch_embed_forward.1} parent=47 // pred_region
        %p757 = scmp.lt.s32.totalorder %s22, 1
        %s758 = scalar_select %p757, %s22, 1
        %p759 = scmp.lt.s32.totalorder %s23, 0
        %s760 = scalar_select %p759, %s23, 0
        %s761 = smul.addr %s758, 12
        %s762 = sadd.s32 %s760, %s761
        %s763 = smul.addr %s762, 8
        %s764 = scalar_lea.vmem %s5, %s763
      $region52: #{patch_embed_forward.1} parent=47 // pred_fallthru
        _
    $region48: #{patch_embed_forward.1} parent=5 // pred_fallthru
      _
  $region6: #{patch_embed_forward.1} parent=0 // loop_footer
    %s15 = sadd.s32 1, %s11
  $region7: #{patch_embed_forward.1} parent=0 // loop_footer_branch
    %10 = sbr.rel target = $region3
  $region8: #{patch_embed_forward.1} parent=0 // loop_exit
    _

</llo_original>
